<compile_context>
chip_gen: v5e
topology: v5e:2x2
jax: 0.10.0
libtpu: 0.0.40
codegen_flags: <defaults>
</compile_context>

<pallas_src>
import functools

import jax
import jax.numpy as jnp
from jax.experimental import pallas as pl
from jax.experimental.pallas import tpu as pltpu

_N_OUT = 3      # predictor head width
_N_OUT_PAD = 8  # padded head width (one sublane group; full-dim block => legal)


def _predictor_kernel(ux_ref, vx_ref, w1a_ref, w1b_ref, b1_ref, w2_ref, b2_ref,
                      out_ref):
    # First linear layer as two K=F MXU dots on the two input halves (no concat).
    h = jnp.dot(ux_ref[...], w1a_ref[...],
                preferred_element_type=jnp.float32,
                precision=jax.lax.Precision.HIGHEST)
    h = h + jnp.dot(vx_ref[...], w1b_ref[...],
                    preferred_element_type=jnp.float32,
                    precision=jax.lax.Precision.HIGHEST)
    h = jnp.maximum(h + b1_ref[...], 0.0)          # bias + ReLU on the VPU
    # Second linear layer: head padded 3 -> 8 columns only.
    o = jnp.dot(h, w2_ref[...],
                preferred_element_type=jnp.float32,
                precision=jax.lax.Precision.HIGHEST)
    out_ref[...] = (o + b2_ref[...]).astype(out_ref.dtype)


def _round_up(x, m):
    return (x + m - 1) // m * m


@functools.partial(jax.jit, static_argnames=("tile_b",))
def predictor_forward(ux, vx, w1, b1, w2, b2, *, tile_b=4096):
    """Predictor '2': Linear(2F->F) -> ReLU -> Linear(F->3).

    ux, vx: [B, F]; w1: [2F, F]; b1: [F]; w2: [F, 3]; b2: [3]  ->  [B, 3].
    """
    B, F = ux.shape
    assert vx.shape == (B, F)
    assert w1.shape == (2 * F, F) and b1.shape == (F,)
    assert w2.shape == (F, _N_OUT) and b2.shape == (_N_OUT,)

    # ---- trace-time parameter prep (tiny arrays, no per-row HBM cost) --------
    w1a = w1[:F]                         # [F, F] applied to ux
    w1b = w1[F:]                         # [F, F] applied to vx
    b1_2d = b1.reshape(1, F)
    w2_pad = jnp.zeros((F, _N_OUT_PAD), w2.dtype).at[:, :_N_OUT].set(w2)
    b2_pad = jnp.zeros((1, _N_OUT_PAD), b2.dtype).at[:, :_N_OUT].set(b2)

    # ---- batch tiling ---------------------------------------------------------
    # Multiple of 8 sublanes (lowering requirement), capped at tile_b.
    tb = _round_up(min(tile_b, B), 8)
    # Keep >= 2 grid steps when the batch is large enough that splitting it
    # across the two v7x TensorCores matters (harmless on 1-TC chips).
    if B >= 2048 and tb >= B:
        tb = _round_up((B + 1) // 2, 8)
    grid = (pl.cdiv(B, tb),)
    # Note: the final partial tile (if B % tb != 0) computes garbage for its
    # out-of-bounds rows; Pallas discards those rows on writeback.

    cost = pl.CostEstimate(
        flops=2 * B * (2 * F * F + F * _N_OUT),
        transcendentals=0,
        bytes_accessed=4 * (B * (2 * F + _N_OUT_PAD)
                            + 2 * F * F + F + F * _N_OUT_PAD + _N_OUT_PAD),
    )

    out = pl.pallas_call(
        _predictor_kernel,
        out_shape=jax.ShapeDtypeStruct((B, _N_OUT_PAD), jnp.float32),
        grid_spec=pltpu.PrefetchScalarGridSpec(
            num_scalar_prefetch=0,
            grid=grid,
            in_specs=[
                pl.BlockSpec((tb, F), lambda i: (i, 0)),           # ux tile (pipelined)
                pl.BlockSpec((tb, F), lambda i: (i, 0)),           # vx tile (pipelined)
                pl.BlockSpec((F, F), lambda i: (0, 0)),            # w1[:F]  (resident)
                pl.BlockSpec((F, F), lambda i: (0, 0)),            # w1[F:]  (resident)
                pl.BlockSpec((1, F), lambda i: (0, 0)),            # b1      (resident)
                pl.BlockSpec((F, _N_OUT_PAD), lambda i: (0, 0)),   # w2 pad  (resident)
                pl.BlockSpec((1, _N_OUT_PAD), lambda i: (0, 0)),   # b2 pad  (resident)
            ],
            out_specs=pl.BlockSpec((tb, _N_OUT_PAD), lambda i: (i, 0)),
        ),
        compiler_params=pltpu.CompilerParams(
            dimension_semantics=("parallel",),   # batch axis -> both TCs on v7x
            vmem_limit_bytes=32 * 1024 * 1024,   # lifts v5e's 16 MiB scoped default
        ),
        cost_estimate=cost,
    )(ux, vx, w1a, w1b, b1_2d, w2_pad, b2_pad)

    return out[:, :_N_OUT]


def _reference_forward(ux, vx, w1, b1, w2, b2):
    x = jnp.concatenate([ux, vx], axis=-1)
    h = jnp.maximum(
        jnp.dot(x, w1, precision=jax.lax.Precision.HIGHEST) + b1, 0.0)
    return jnp.dot(h, w2, precision=jax.lax.Precision.HIGHEST) + b2


if __name__ == "__main__":
    key = jax.random.PRNGKey(0)
    k_ux, k_vx, k_w1, k_b1, k_w2, k_b2 = jax.random.split(key, 6)

    batch = 8
    feature_dim = 32  # args.feature_dim

    ux = jax.random.normal(k_ux, (batch, feature_dim), dtype=jnp.float32)
    vx = jax.random.normal(k_vx, (batch, feature_dim), dtype=jnp.float32)

    # Deterministic parameter init (nn.Linear-style uniform bounds)
    def uniform(k, shape, fan_in):
        bound = 1.0 / (fan_in ** 0.5)
        return jax.random.uniform(k, shape, jnp.float32, -bound, bound)

    w1 = uniform(k_w1, (2 * feature_dim, feature_dim), 2 * feature_dim)
    b1 = uniform(k_b1, (feature_dim,), 2 * feature_dim)
    w2 = uniform(k_w2, (feature_dim, 3), feature_dim)
    b2 = uniform(k_b2, (3,), feature_dim)

    # Small-shape run (single grid step).
    out = predictor_forward(ux, vx, w1, b1, w2, b2)
    out = jax.block_until_ready(out)
    ref = _reference_forward(ux, vx, w1, b1, w2, b2)
    assert out.shape == (batch, 3)
    assert jnp.allclose(out, ref, atol=1e-5, rtol=1e-5)

    # Extra validation: batch that is not a multiple of the tile, exercising the
    # multi-step pipelined grid and the clipped final partial block.
    big_b = 300
    k_u2, k_v2 = jax.random.split(jax.random.PRNGKey(1), 2)
    ux2 = jax.random.normal(k_u2, (big_b, feature_dim), dtype=jnp.float32)
    vx2 = jax.random.normal(k_v2, (big_b, feature_dim), dtype=jnp.float32)
    out2 = predictor_forward(ux2, vx2, w1, b1, w2, b2, tile_b=128)
    out2 = jax.block_until_ready(out2)
    ref2 = _reference_forward(ux2, vx2, w1, b1, w2, b2)
    assert out2.shape == (big_b, 3)
    assert jnp.allclose(out2, ref2, atol=1e-5, rtol=1e-5)

    print("KERNEL_OK")
</pallas_src>

<mosaic_0001>
module attributes {stable_mosaic.version = 11 : i64} {
  func.func @_predictor_kernel(%arg0: i32, %arg1: memref<8x32xf32, #tpu.memory_space<vmem>>, %arg2: memref<8x32xf32, #tpu.memory_space<vmem>>, %arg3: memref<32x32xf32, #tpu.memory_space<vmem>>, %arg4: memref<32x32xf32, #tpu.memory_space<vmem>>, %arg5: memref<1x32xf32, #tpu.memory_space<vmem>>, %arg6: memref<32x8xf32, #tpu.memory_space<vmem>>, %arg7: memref<1x8xf32, #tpu.memory_space<vmem>>, %arg8: memref<8x8xf32, #tpu.memory_space<vmem>>) attributes {dimension_semantics = [#tpu.dimension_semantics<parallel>], iteration_bounds = array<i64: 1>, scalar_prefetch = 0 : i64, scratch_operands = 0 : i64, tpu.core_type = #tpu.core_type<tc>, window_params = [{transform_indices = @transform_0, window_bounds = array<i64: 8, 32>}, {transform_indices = @transform_1, window_bounds = array<i64: 8, 32>}, {pipeline_mode = #tpu.pipeline_mode<synchronous>, transform_indices = @transform_2, window_bounds = array<i64: 32, 32>}, {pipeline_mode = #tpu.pipeline_mode<synchronous>, transform_indices = @transform_3, window_bounds = array<i64: 32, 32>}, {pipeline_mode = #tpu.pipeline_mode<synchronous>, transform_indices = @transform_4, window_bounds = array<i64: 1, 32>}, {pipeline_mode = #tpu.pipeline_mode<synchronous>, transform_indices = @transform_5, window_bounds = array<i64: 32, 8>}, {pipeline_mode = #tpu.pipeline_mode<synchronous>, transform_indices = @transform_6, window_bounds = array<i64: 1, 8>}, {transform_indices = @transform_7, window_bounds = array<i64: 8, 8>}]} {
    %c0 = arith.constant 0 : index
    %c0_0 = arith.constant 0 : index
    %0 = vector.load %arg1[%c0, %c0_0] : memref<8x32xf32, #tpu.memory_space<vmem>>, vector<8x32xf32>
    %c0_1 = arith.constant 0 : index
    %c0_2 = arith.constant 0 : index
    %1 = vector.load %arg3[%c0_1, %c0_2] : memref<32x32xf32, #tpu.memory_space<vmem>>, vector<32x32xf32>
    %cst = arith.constant dense<0.000000e+00> : vector<8x32xf32>
    %2 = tpu.matmul %0, %1, %cst {dimension_numbers = #tpu.dot_dimension_numbers<[1], [0], [0], [1], [0, 0, 1, 1], [], []>, precision = #tpu.contract_precision<fp32>} : vector<8x32xf32>, vector<32x32xf32>, vector<8x32xf32> -> vector<8x32xf32>
    %c0_3 = arith.constant 0 : index
    %c0_4 = arith.constant 0 : index
    %3 = vector.load %arg2[%c0_3, %c0_4] : memref<8x32xf32, #tpu.memory_space<vmem>>, vector<8x32xf32>
    %c0_5 = arith.constant 0 : index
    %c0_6 = arith.constant 0 : index
    %4 = vector.load %arg4[%c0_5, %c0_6] : memref<32x32xf32, #tpu.memory_space<vmem>>, vector<32x32xf32>
    %cst_7 = arith.constant dense<0.000000e+00> : vector<8x32xf32>
    %5 = tpu.matmul %3, %4, %cst_7 {dimension_numbers = #tpu.dot_dimension_numbers<[1], [0], [0], [1], [0, 0, 1, 1], [], []>, precision = #tpu.contract_precision<fp32>} : vector<8x32xf32>, vector<32x32xf32>, vector<8x32xf32> -> vector<8x32xf32>
    %6 = arith.addf %2, %5 : vector<8x32xf32>
    %c0_8 = arith.constant 0 : index
    %c0_9 = arith.constant 0 : index
    %7 = vector.load %arg5[%c0_8, %c0_9] : memref<1x32xf32, #tpu.memory_space<vmem>>, vector<1x32xf32>
    %8 = vector.broadcast %7 : vector<1x32xf32> to vector<8x32xf32>
    %9 = arith.addf %6, %8 : vector<8x32xf32>
    %cst_10 = arith.constant 0.000000e+00 : f32
    %10 = vector.broadcast %cst_10 : f32 to vector<8x32xf32>
    %11 = arith.maximumf %9, %10 : vector<8x32xf32>
    %c0_11 = arith.constant 0 : index
    %c0_12 = arith.constant 0 : index
    %12 = vector.load %arg6[%c0_11, %c0_12] : memref<32x8xf32, #tpu.memory_space<vmem>>, vector<32x8xf32>
    %cst_13 = arith.constant dense<0.000000e+00> : vector<8x8xf32>
    %13 = tpu.matmul %11, %12, %cst_13 {dimension_numbers = #tpu.dot_dimension_numbers<[1], [0], [0], [1], [0, 0, 1, 1], [], []>, precision = #tpu.contract_precision<fp32>} : vector<8x32xf32>, vector<32x8xf32>, vector<8x8xf32> -> vector<8x8xf32>
    %c0_14 = arith.constant 0 : index
    %c0_15 = arith.constant 0 : index
    %14 = vector.load %arg7[%c0_14, %c0_15] : memref<1x8xf32, #tpu.memory_space<vmem>>, vector<1x8xf32>
    %15 = vector.broadcast %14 : vector<1x8xf32> to vector<8x8xf32>
    %16 = arith.addf %13, %15 : vector<8x8xf32>
    %c0_16 = arith.constant 0 : index
    %c0_17 = arith.constant 0 : index
    %17 = vector.load %arg8[%c0_16, %c0_17] : memref<8x8xf32, #tpu.memory_space<vmem>>, vector<8x8xf32>
    tpu.vector_store %arg8[%c0_16, %c0_17], %16 {strides = array<i32>} : memref<8x8xf32, #tpu.memory_space<vmem>>, vector<8x8xf32>,
    return
  }
  func.func @transform_0(%arg0: i32) -> (i32, i32) {
    %c0_i32 = arith.constant 0 : i32
    %c0_i32_0 = arith.constant 0 : i32
    return %arg0, %c0_i32 : i32, i32
  }
  func.func @transform_1(%arg0: i32) -> (i32, i32) {
    %c0_i32 = arith.constant 0 : i32
    %c0_i32_0 = arith.constant 0 : i32
    return %arg0, %c0_i32 : i32, i32
  }
  func.func @transform_2(%arg0: i32) -> (i32, i32) {
    %c0_i32 = arith.constant 0 : i32
    %c0_i32_0 = arith.constant 0 : i32
    %c0_i32_1 = arith.constant 0 : i32
    return %c0_i32, %c0_i32_0 : i32, i32
  }
  func.func @transform_3(%arg0: i32) -> (i32, i32) {
    %c0_i32 = arith.constant 0 : i32
    %c0_i32_0 = arith.constant 0 : i32
    %c0_i32_1 = arith.constant 0 : i32
    return %c0_i32, %c0_i32_0 : i32, i32
  }
  func.func @transform_4(%arg0: i32) -> (i32, i32) {
    %c0_i32 = arith.constant 0 : i32
    %c0_i32_0 = arith.constant 0 : i32
    %c0_i32_1 = arith.constant 0 : i32
    return %c0_i32, %c0_i32_0 : i32, i32
  }
  func.func @transform_5(%arg0: i32) -> (i32, i32) {
    %c0_i32 = arith.constant 0 : i32
    %c0_i32_0 = arith.constant 0 : i32
    %c0_i32_1 = arith.constant 0 : i32
    return %c0_i32, %c0_i32_0 : i32, i32
  }
  func.func @transform_6(%arg0: i32) -> (i32, i32) {
    %c0_i32 = arith.constant 0 : i32
    %c0_i32_0 = arith.constant 0 : i32
    %c0_i32_1 = arith.constant 0 : i32
    return %c0_i32, %c0_i32_0 : i32, i32
  }
  func.func @transform_7(%arg0: i32) -> (i32, i32) {
    %c0_i32 = arith.constant 0 : i32
    %c0_i32_0 = arith.constant 0 : i32
    return %arg0, %c0_i32 : i32, i32
  }
}

</mosaic_0001>

<llo_original>
// kernel: predictor_forward.1
$region0: #{predictor_forward.1}
  #allocation0 [shape = 'u32[]', space=smem, size = 0x4, offset = 0x4, fixed_abs, tag = 'smem constant byte address 0x4 - core index']
  #allocation1 [shape = 'u32[72,128]{1,0:T(1,128)}', space=vmem, size = 0x9000, scoped, tag = 'internal scratch']
  %s0 = inlined_call_operand.vmem [shape: f32[8,32], index: 0, kind: input, shape index: {}]
  %s1 = inlined_call_operand.vmem [shape: f32[8,32], index: 1, kind: input, shape index: {}]
  %s2 = inlined_call_operand.vmem [shape: f32[32,32], index: 2, kind: input, shape index: {}]
  %s3 = inlined_call_operand.vmem [shape: f32[32,32], index: 3, kind: input, shape index: {}]
  %s4 = inlined_call_operand.vmem [shape: f32[1,32], index: 4, kind: input, shape index: {}]
  %s5 = inlined_call_operand.vmem [shape: f32[32,8], index: 5, kind: input, shape index: {}]
  %s6 = inlined_call_operand.vmem [shape: f32[1,8], index: 6, kind: input, shape index: {}]
  %s7 = inlined_call_operand.vmem [shape: f32[8,8], index: 7, kind: output, shape index: {}]
  %s8 = sld [smem:[#allocation0]]
  $region38: #{predictor_forward.1} parent=0
    _
  %s10 = ssub.s32 1, %s8
  %s11 = scalar_select 0, %s10, %s8
  // Predicated region
  $region2: #{predictor_forward.1} parent=0 // pred_check
    _
  $region3: #{predictor_forward.1} parent=0 // pred_check_branch
    %13 = sbr.rel (0) target = $region5
  $region4: #{predictor_forward.1} parent=0 // pred_region
    _
  $region5: #{predictor_forward.1} parent=0 // pred_fallthru
    _
  // Predicated region
  $region6: #{predictor_forward.1} parent=0 // pred_check
    _
  $region7: #{predictor_forward.1} parent=0 // pred_check_branch
    %15 = sbr.rel (0) target = $region9
  $region8: #{predictor_forward.1} parent=0 // pred_region
    _
  $region9: #{predictor_forward.1} parent=0 // pred_fallthru
    _
  // Predicated region
  $region10: #{predictor_forward.1} parent=0 // pred_check
    _
  $region11: #{predictor_forward.1} parent=0 // pred_check_branch
    %17 = sbr.rel (0) target = $region13
  $region12: #{predictor_forward.1} parent=0 // pred_region
    _
  $region13: #{predictor_forward.1} parent=0 // pred_fallthru
    _
  // Predicated region
  $region14: #{predictor_forward.1} parent=0 // pred_check
    _
  $region15: #{predictor_forward.1} parent=0 // pred_check_branch
    %19 = sbr.rel (0) target = $region17
  $region16: #{predictor_forward.1} parent=0 // pred_region
    _
  $region17: #{predictor_forward.1} parent=0 // pred_fallthru
    _
  // Predicated region
  $region18: #{predictor_forward.1} parent=0 // pred_check
    _
  $region19: #{predictor_forward.1} parent=0 // pred_check_branch
    %21 = sbr.rel (0) target = $region21
  $region20: #{predictor_forward.1} parent=0 // pred_region
    _
  $region21: #{predictor_forward.1} parent=0 // pred_fallthru
    _
  // Predicated region
  $region22: #{predictor_forward.1} parent=0 // pred_check
    _
  $region23: #{predictor_forward.1} parent=0 // pred_check_branch
    %23 = sbr.rel (0) target = $region25
  $region24: #{predictor_forward.1} parent=0 // pred_region
    _
  $region25: #{predictor_forward.1} parent=0 // pred_fallthru
    _
  // Predicated region
  $region26: #{predictor_forward.1} parent=0 // pred_check
    _
  $region27: #{predictor_forward.1} parent=0 // pred_check_branch
    %25 = sbr.rel (0) target = $region29
  $region28: #{predictor_forward.1} parent=0 // pred_region
    _
  $region29: #{predictor_forward.1} parent=0 // pred_fallthru
    _
  %v26 = vld [vmem:[%s0] sm:$0xff]
  %v27 = vld [vmem:[%s2] sm:$0xff]
  %v28 = vld [vmem:[%s2 + $0x8] sm:$0xff]
  %v29 = vld [vmem:[%s2 + $0x10] sm:$0xff]
  %v30 = vld [vmem:[%s2 + $0x18] sm:$0xff]
  %v31 = vld [vmem:[%s1] sm:$0xff]
  %v32 = vld [vmem:[%s3] sm:$0xff]
  %v33 = vld [vmem:[%s3 + $0x8] sm:$0xff]
  %v34 = vld [vmem:[%s3 + $0x10] sm:$0xff]
  %v35 = vld [vmem:[%s3 + $0x18] sm:$0xff]
  %vm36 = vcmask 261120
  %v38 = vsel %vm36, %v31, 0
  %40 = vmatpush.msra.mxu0 0.0
  %41 = vmatpush.msra.mxu0 0.0
  %42 = vmatpush.msra.mxu0 0.0
  %43 = vmatpush.msra.mxu0 0.0
  %44 = vmatpush.msra.mxu0 0.0
  %45 = vmatpush.msra.mxu0 0.0
  %46 = vmatpush.msra.mxu0 0.0
  %47 = vmatpush.msra.mxu0 0.0
  %48 = vmatpush.msra.mxu0 0.0
  %49 = vmatpush.msra.mxu0 0.0
  %50 = vmatpush.msra.mxu0 0.0
  %51 = vmatpush.msra.mxu0 0.0
  %v52 = vand.u32 %v35, 4294901760
  %53 = vmatpush.msra.mxu0 %v52
  %v54 = vand.u32 %v34, 4294901760
  %55 = vmatpush.msra.mxu0 %v54
  %v56 = vand.u32 %v33, 4294901760
  %57 = vmatpush.msra.mxu0 %v56
  %v58 = vand.u32 %v32, 4294901760
  %59 = vmatpush.msra.mxu0 %v58
  %v60 = vand.u32 %v38, 4294901760
  %v61 = vsub.f32 %v38, %v60
  %v62 = vand.u32 %v61, 4294901760
  %v63 = vsub.f32 %v61, %v62
  %v64 = vand.u32 %v63, 4294901760
  %65 = vmatmul.f32.gmra.mxu0 %v64
  %v66 = vpop.f32.mrf.mxu0
  %v67 = vadd.f32 0.0, %v66
  %68 = vdwg.mxu0
  %69 = vmatpush.msra.mxu0 0.0
  %70 = vmatpush.msra.mxu0 0.0
  %71 = vmatpush.msra.mxu0 0.0
  %72 = vmatpush.msra.mxu0 0.0
  %73 = vmatpush.msra.mxu0 0.0
  %74 = vmatpush.msra.mxu0 0.0
  %75 = vmatpush.msra.mxu0 0.0
  %76 = vmatpush.msra.mxu0 0.0
  %77 = vmatpush.msra.mxu0 0.0
  %78 = vmatpush.msra.mxu0 0.0
  %79 = vmatpush.msra.mxu0 0.0
  %80 = vmatpush.msra.mxu0 0.0
  %v81 = vand.u32 %v35, 4294901760
  %v82 = vsub.f32 %v35, %v81
  %v83 = vand.u32 %v82, 4294901760
  %v84 = vsub.f32 %v82, %v83
  %v85 = vand.u32 %v84, 4294901760
  %86 = vmatpush.msra.mxu0 %v85
  %v87 = vand.u32 %v34, 4294901760
  %v88 = vsub.f32 %v34, %v87
  %v89 = vand.u32 %v88, 4294901760
  %v90 = vsub.f32 %v88, %v89
  %v91 = vand.u32 %v90, 4294901760
  %92 = vmatpush.msra.mxu0 %v91
  %v93 = vand.u32 %v33, 4294901760
  %v94 = vsub.f32 %v33, %v93
  %v95 = vand.u32 %v94, 4294901760
  %v96 = vsub.f32 %v94, %v95
  %v97 = vand.u32 %v96, 4294901760
  %98 = vmatpush.msra.mxu0 %v97
  %v99 = vand.u32 %v32, 4294901760
  %v100 = vsub.f32 %v32, %v99
  %v101 = vand.u32 %v100, 4294901760
  %v102 = vsub.f32 %v100, %v101
  %v103 = vand.u32 %v102, 4294901760
  %104 = vmatpush.msra.mxu0 %v103
  %v105 = vand.u32 %v38, 4294901760
  %106 = vmatmul.f32.gmra.mxu0 %v105
  %v107 = vpop.f32.mrf.mxu0
  %v108 = vadd.f32 %v67, %v107
  %109 = vdwg.mxu0
  %110 = vmatpush.msra.mxu0 0.0
  %111 = vmatpush.msra.mxu0 0.0
  %112 = vmatpush.msra.mxu0 0.0
  %113 = vmatpush.msra.mxu0 0.0
  %114 = vmatpush.msra.mxu0 0.0
  %115 = vmatpush.msra.mxu0 0.0
  %116 = vmatpush.msra.mxu0 0.0
  %117 = vmatpush.msra.mxu0 0.0
  %118 = vmatpush.msra.mxu0 0.0
  %119 = vmatpush.msra.mxu0 0.0
  %120 = vmatpush.msra.mxu0 0.0
  %121 = vmatpush.msra.mxu0 0.0
  %v122 = vand.u32 %v35, 4294901760
  %v123 = vsub.f32 %v35, %v122
  %124 = vmatpush.msra.mxu0 %v123
  %v125 = vand.u32 %v34, 4294901760
  %v126 = vsub.f32 %v34, %v125
  %127 = vmatpush.msra.mxu0 %v126
  %v128 = vand.u32 %v33, 4294901760
  %v129 = vsub.f32 %v33, %v128
  %130 = vmatpush.msra.mxu0 %v129
  %v131 = vand.u32 %v32, 4294901760
  %v132 = vsub.f32 %v32, %v131
  %133 = vmatpush.msra.mxu0 %v132
  %v134 = vand.u32 %v38, 4294901760
  %v135 = vsub.f32 %v38, %v134
  %136 = vmatmul.f32.gmra.mxu0 %v135
  %v137 = vpop.f32.mrf.mxu0
  %v138 = vadd.f32 %v108, %v137
  %139 = vdwg.mxu0
  %140 = vmatpush.msra.mxu0 0.0
  %141 = vmatpush.msra.mxu0 0.0
  %142 = vmatpush.msra.mxu0 0.0
  %143 = vmatpush.msra.mxu0 0.0
  %144 = vmatpush.msra.mxu0 0.0
  %145 = vmatpush.msra.mxu0 0.0
  %146 = vmatpush.msra.mxu0 0.0
  %147 = vmatpush.msra.mxu0 0.0
  %148 = vmatpush.msra.mxu0 0.0
  %149 = vmatpush.msra.mxu0 0.0
  %150 = vmatpush.msra.mxu0 0.0
  %151 = vmatpush.msra.mxu0 0.0
  %v152 = vand.u32 %v35, 4294901760
  %153 = vmatpush.msra.mxu0 %v152
  %v154 = vand.u32 %v34, 4294901760
  %155 = vmatpush.msra.mxu0 %v154
  %v156 = vand.u32 %v33, 4294901760
  %157 = vmatpush.msra.mxu0 %v156
  %v158 = vand.u32 %v32, 4294901760
  %159 = vmatpush.msra.mxu0 %v158
  %v160 = vand.u32 %v38, 4294901760
  %v161 = vsub.f32 %v38, %v160
  %v162 = vand.u32 %v161, 4294901760
  %163 = vmatmul.f32.gmra.mxu0 %v162
  %v164 = vpop.f32.mrf.mxu0
  %v165 = vadd.f32 %v138, %v164
  %166 = vdwg.mxu0
  %167 = vmatpush.msra.mxu0 0.0
  %168 = vmatpush.msra.mxu0 0.0
  %169 = vmatpush.msra.mxu0 0.0
  %170 = vmatpush.msra.mxu0 0.0
  %171 = vmatpush.msra.mxu0 0.0
  %172 = vmatpush.msra.mxu0 0.0
  %173 = vmatpush.msra.mxu0 0.0
  %174 = vmatpush.msra.mxu0 0.0
  %175 = vmatpush.msra.mxu0 0.0
  %176 = vmatpush.msra.mxu0 0.0
  %177 = vmatpush.msra.mxu0 0.0
  %178 = vmatpush.msra.mxu0 0.0
  %v179 = vand.u32 %v35, 4294901760
  %v180 = vsub.f32 %v35, %v179
  %v181 = vand.u32 %v180, 4294901760
  %182 = vmatpush.msra.mxu0 %v181
  %v183 = vand.u32 %v34, 4294901760
  %v184 = vsub.f32 %v34, %v183
  %v185 = vand.u32 %v184, 4294901760
  %186 = vmatpush.msra.mxu0 %v185
  %v187 = vand.u32 %v33, 4294901760
  %v188 = vsub.f32 %v33, %v187
  %v189 = vand.u32 %v188, 4294901760
  %190 = vmatpush.msra.mxu0 %v189
  %v191 = vand.u32 %v32, 4294901760
  %v192 = vsub.f32 %v32, %v191
  %v193 = vand.u32 %v192, 4294901760
  %194 = vmatpush.msra.mxu0 %v193
  %v195 = vand.u32 %v38, 4294901760
  %196 = vmatmul.f32.gmra.mxu0 %v195
  %v197 = vpop.f32.mrf.mxu0
  %v198 = vadd.f32 %v165, %v197
  %199 = vdwg.mxu0
  %200 = vmatpush.msra.mxu0 0.0
  %201 = vmatpush.msra.mxu0 0.0
  %202 = vmatpush.msra.mxu0 0.0
  %203 = vmatpush.msra.mxu0 0.0
  %204 = vmatpush.msra.mxu0 0.0
  %205 = vmatpush.msra.mxu0 0.0
  %206 = vmatpush.msra.mxu0 0.0
  %207 = vmatpush.msra.mxu0 0.0
  %208 = vmatpush.msra.mxu0 0.0
  %209 = vmatpush.msra.mxu0 0.0
  %210 = vmatpush.msra.mxu0 0.0
  %211 = vmatpush.msra.mxu0 0.0
  %v212 = vand.u32 %v35, 4294901760
  %213 = vmatpush.msra.mxu0 %v212
  %v214 = vand.u32 %v34, 4294901760
  %215 = vmatpush.msra.mxu0 %v214
  %v216 = vand.u32 %v33, 4294901760
  %217 = vmatpush.msra.mxu0 %v216
  %v218 = vand.u32 %v32, 4294901760
  %219 = vmatpush.msra.mxu0 %v218
  %v220 = vand.u32 %v38, 4294901760
  %221 = vmatmul.f32.gmra.mxu0 %v220
  %v222 = vpop.f32.mrf.mxu0
  %v223 = vadd.f32 %v198, %v222
  %224 = vdwg.mxu0
  %v226 = vsel %vm36, %v26, 0
  %228 = vmatpush.msra.mxu0 0.0
  %229 = vmatpush.msra.mxu0 0.0
  %230 = vmatpush.msra.mxu0 0.0
  %231 = vmatpush.msra.mxu0 0.0
  %232 = vmatpush.msra.mxu0 0.0
  %233 = vmatpush.msra.mxu0 0.0
  %234 = vmatpush.msra.mxu0 0.0
  %235 = vmatpush.msra.mxu0 0.0
  %236 = vmatpush.msra.mxu0 0.0
  %237 = vmatpush.msra.mxu0 0.0
  %238 = vmatpush.msra.mxu0 0.0
  %239 = vmatpush.msra.mxu0 0.0
  %v240 = vand.u32 %v30, 4294901760
  %241 = vmatpush.msra.mxu0 %v240
  %v242 = vand.u32 %v29, 4294901760
  %243 = vmatpush.msra.mxu0 %v242
  %v244 = vand.u32 %v28, 4294901760
  %245 = vmatpush.msra.mxu0 %v244
  %v246 = vand.u32 %v27, 4294901760
  %247 = vmatpush.msra.mxu0 %v246
  %v248 = vand.u32 %v226, 4294901760
  %v249 = vsub.f32 %v226, %v248
  %v250 = vand.u32 %v249, 4294901760
  %v251 = vsub.f32 %v249, %v250
  %v252 = vand.u32 %v251, 4294901760
  %253 = vmatmul.f32.gmra.mxu0 %v252
  %v254 = vpop.f32.mrf.mxu0
  %v255 = vadd.f32 %v223, %v254
  %256 = vdwg.mxu0
  %257 = vmatpush.msra.mxu0 0.0
  %258 = vmatpush.msra.mxu0 0.0
  %259 = vmatpush.msra.mxu0 0.0
  %260 = vmatpush.msra.mxu0 0.0
  %261 = vmatpush.msra.mxu0 0.0
  %262 = vmatpush.msra.mxu0 0.0
  %263 = vmatpush.msra.mxu0 0.0
  %264 = vmatpush.msra.mxu0 0.0
  %265 = vmatpush.msra.mxu0 0.0
  %266 = vmatpush.msra.mxu0 0.0
  %267 = vmatpush.msra.mxu0 0.0
  %268 = vmatpush.msra.mxu0 0.0
  %v269 = vand.u32 %v30, 4294901760
  %v270 = vsub.f32 %v30, %v269
  %v271 = vand.u32 %v270, 4294901760
  %v272 = vsub.f32 %v270, %v271
  %v273 = vand.u32 %v272, 4294901760
  %274 = vmatpush.msra.mxu0 %v273
  %v275 = vand.u32 %v29, 4294901760
  %v276 = vsub.f32 %v29, %v275
  %v277 = vand.u32 %v276, 4294901760
  %v278 = vsub.f32 %v276, %v277
  %v279 = vand.u32 %v278, 4294901760
  %280 = vmatpush.msra.mxu0 %v279
  %v281 = vand.u32 %v28, 4294901760
  %v282 = vsub.f32 %v28, %v281
  %v283 = vand.u32 %v282, 4294901760
  %v284 = vsub.f32 %v282, %v283
  %v285 = vand.u32 %v284, 4294901760
  %286 = vmatpush.msra.mxu0 %v285
  %v287 = vand.u32 %v27, 4294901760
  %v288 = vsub.f32 %v27, %v287
  %v289 = vand.u32 %v288, 4294901760
  %v290 = vsub.f32 %v288, %v289
  %v291 = vand.u32 %v290, 4294901760
  %292 = vmatpush.msra.mxu0 %v291
  %v293 = vand.u32 %v226, 4294901760
  %294 = vmatmul.f32.gmra.mxu0 %v293
  %v295 = vpop.f32.mrf.mxu0
  %v296 = vadd.f32 %v255, %v295
  %297 = vdwg.mxu0
  %298 = vmatpush.msra.mxu0 0.0
  %299 = vmatpush.msra.mxu0 0.0
  %300 = vmatpush.msra.mxu0 0.0
  %301 = vmatpush.msra.mxu0 0.0
  %302 = vmatpush.msra.mxu0 0.0
  %303 = vmatpush.msra.mxu0 0.0
  %304 = vmatpush.msra.mxu0 0.0
  %305 = vmatpush.msra.mxu0 0.0
  %306 = vmatpush.msra.mxu0 0.0
  %307 = vmatpush.msra.mxu0 0.0
  %308 = vmatpush.msra.mxu0 0.0
  %309 = vmatpush.msra.mxu0 0.0
  %v310 = vand.u32 %v30, 4294901760
  %v311 = vsub.f32 %v30, %v310
  %312 = vmatpush.msra.mxu0 %v311
  %v313 = vand.u32 %v29, 4294901760
  %v314 = vsub.f32 %v29, %v313
  %315 = vmatpush.msra.mxu0 %v314
  %v316 = vand.u32 %v28, 4294901760
  %v317 = vsub.f32 %v28, %v316
  %318 = vmatpush.msra.mxu0 %v317
  %v319 = vand.u32 %v27, 4294901760
  %v320 = vsub.f32 %v27, %v319
  %321 = vmatpush.msra.mxu0 %v320
  %v322 = vand.u32 %v226, 4294901760
  %v323 = vsub.f32 %v226, %v322
  %324 = vmatmul.f32.gmra.mxu0 %v323
  %v325 = vpop.f32.mrf.mxu0
  %v326 = vadd.f32 %v296, %v325
  %327 = vdwg.mxu0
  %328 = vmatpush.msra.mxu0 0.0
  %329 = vmatpush.msra.mxu0 0.0
  %330 = vmatpush.msra.mxu0 0.0
  %331 = vmatpush.msra.mxu0 0.0
  %332 = vmatpush.msra.mxu0 0.0
  %333 = vmatpush.msra.mxu0 0.0
  %334 = vmatpush.msra.mxu0 0.0
  %335 = vmatpush.msra.mxu0 0.0
  %336 = vmatpush.msra.mxu0 0.0
  %337 = vmatpush.msra.mxu0 0.0
  %338 = vmatpush.msra.mxu0 0.0
  %339 = vmatpush.msra.mxu0 0.0
  %v340 = vand.u32 %v30, 4294901760
  %341 = vmatpush.msra.mxu0 %v340
  %v342 = vand.u32 %v29, 4294901760
  %343 = vmatpush.msra.mxu0 %v342
  %v344 = vand.u32 %v28, 4294901760
  %345 = vmatpush.msra.mxu0 %v344
  %v346 = vand.u32 %v27, 4294901760
  %347 = vmatpush.msra.mxu0 %v346
  %v348 = vand.u32 %v226, 4294901760
  %v349 = vsub.f32 %v226, %v348
  %v350 = vand.u32 %v349, 4294901760
  %351 = vmatmul.f32.gmra.mxu0 %v350
  %v352 = vpop.f32.mrf.mxu0
  %v353 = vadd.f32 %v326, %v352
  %354 = vdwg.mxu0
  %355 = vmatpush.msra.mxu0 0.0
  %356 = vmatpush.msra.mxu0 0.0
  %357 = vmatpush.msra.mxu0 0.0
  %358 = vmatpush.msra.mxu0 0.0
  %359 = vmatpush.msra.mxu0 0.0
  %360 = vmatpush.msra.mxu0 0.0
  %361 = vmatpush.msra.mxu0 0.0
  %362 = vmatpush.msra.mxu0 0.0
  %363 = vmatpush.msra.mxu0 0.0
  %364 = vmatpush.msra.mxu0 0.0
  %365 = vmatpush.msra.mxu0 0.0
  %366 = vmatpush.msra.mxu0 0.0
  %v367 = vand.u32 %v30, 4294901760
  %v368 = vsub.f32 %v30, %v367
  %v369 = vand.u32 %v368, 4294901760
  %370 = vmatpush.msra.mxu0 %v369
  %v371 = vand.u32 %v29, 4294901760
  %v372 = vsub.f32 %v29, %v371
  %v373 = vand.u32 %v372, 4294901760
  %374 = vmatpush.msra.mxu0 %v373
  %v375 = vand.u32 %v28, 4294901760
  %v376 = vsub.f32 %v28, %v375
  %v377 = vand.u32 %v376, 4294901760
  %378 = vmatpush.msra.mxu0 %v377
  %v379 = vand.u32 %v27, 4294901760
  %v380 = vsub.f32 %v27, %v379
  %v381 = vand.u32 %v380, 4294901760
  %382 = vmatpush.msra.mxu0 %v381
  %v383 = vand.u32 %v226, 4294901760
  %384 = vmatmul.f32.gmra.mxu0 %v383
  %v385 = vpop.f32.mrf.mxu0
  %v386 = vadd.f32 %v353, %v385
  %387 = vdwg.mxu0
  %388 = vmatpush.msra.mxu0 0.0
  %389 = vmatpush.msra.mxu0 0.0
  %390 = vmatpush.msra.mxu0 0.0
  %391 = vmatpush.msra.mxu0 0.0
  %392 = vmatpush.msra.mxu0 0.0
  %393 = vmatpush.msra.mxu0 0.0
  %394 = vmatpush.msra.mxu0 0.0
  %395 = vmatpush.msra.mxu0 0.0
  %396 = vmatpush.msra.mxu0 0.0
  %397 = vmatpush.msra.mxu0 0.0
  %398 = vmatpush.msra.mxu0 0.0
  %399 = vmatpush.msra.mxu0 0.0
  %v400 = vand.u32 %v30, 4294901760
  %401 = vmatpush.msra.mxu0 %v400
  %v402 = vand.u32 %v29, 4294901760
  %403 = vmatpush.msra.mxu0 %v402
  %v404 = vand.u32 %v28, 4294901760
  %405 = vmatpush.msra.mxu0 %v404
  %v406 = vand.u32 %v27, 4294901760
  %407 = vmatpush.msra.mxu0 %v406
  %v408 = vand.u32 %v226, 4294901760
  %409 = vmatmul.f32.gmra.mxu0 %v408
  %v410 = vpop.f32.mrf.mxu0
  %v411 = vadd.f32 %v386, %v410
  %412 = vdwg.mxu0
  %v413 = vld [vmem:[%s4] sm:$0x1]
  %v415 = vperm.slane %v413, 0
  %v417 = vadd.f32 %v411, %v415
  %v418 = vmax.f32 %v417, 0.0
  %v419 = vld [vmem:[%s5] sm:$0xff]
  %v420 = vld [vmem:[%s5 + $0x8] sm:$0xff]
  %v421 = vld [vmem:[%s5 + $0x10] sm:$0xff]
  %v422 = vld [vmem:[%s5 + $0x18] sm:$0xff]
  %v423 = vld [vmem:[%s6] sm:$0x1]
  %v425 = vperm.slane %v423, 0
  %v428 = vsel %vm36, %v418, 0
  %430 = vmatpush.msra.mxu0 0.0
  %431 = vmatpush.msra.mxu0 0.0
  %432 = vmatpush.msra.mxu0 0.0
  %433 = vmatpush.msra.mxu0 0.0
  %434 = vmatpush.msra.mxu0 0.0
  %435 = vmatpush.msra.mxu0 0.0
  %436 = vmatpush.msra.mxu0 0.0
  %437 = vmatpush.msra.mxu0 0.0
  %438 = vmatpush.msra.mxu0 0.0
  %439 = vmatpush.msra.mxu0 0.0
  %440 = vmatpush.msra.mxu0 0.0
  %441 = vmatpush.msra.mxu0 0.0
  %v442 = vand.u32 %v422, 4294901760
  %443 = vmatpush.msra.mxu0 %v442
  %v444 = vand.u32 %v421, 4294901760
  %445 = vmatpush.msra.mxu0 %v444
  %v446 = vand.u32 %v420, 4294901760
  %447 = vmatpush.msra.mxu0 %v446
  %v448 = vand.u32 %v419, 4294901760
  %449 = vmatpush.msra.mxu0 %v448
  %v450 = vand.u32 %v428, 4294901760
  %v451 = vsub.f32 %v428, %v450
  %v452 = vand.u32 %v451, 4294901760
  %v453 = vsub.f32 %v451, %v452
  %v454 = vand.u32 %v453, 4294901760
  %455 = vmatmul.f32.gmra.mxu0 %v454
  %v456 = vpop.f32.mrf.mxu0
  %v457 = vadd.f32 %v425, %v456
  %458 = vdwg.mxu0
  %459 = vmatpush.msra.mxu0 0.0
  %460 = vmatpush.msra.mxu0 0.0
  %461 = vmatpush.msra.mxu0 0.0
  %462 = vmatpush.msra.mxu0 0.0
  %463 = vmatpush.msra.mxu0 0.0
  %464 = vmatpush.msra.mxu0 0.0
  %465 = vmatpush.msra.mxu0 0.0
  %466 = vmatpush.msra.mxu0 0.0
  %467 = vmatpush.msra.mxu0 0.0
  %468 = vmatpush.msra.mxu0 0.0
  %469 = vmatpush.msra.mxu0 0.0
  %470 = vmatpush.msra.mxu0 0.0
  %v471 = vand.u32 %v422, 4294901760
  %v472 = vsub.f32 %v422, %v471
  %v473 = vand.u32 %v472, 4294901760
  %v474 = vsub.f32 %v472, %v473
  %v475 = vand.u32 %v474, 4294901760
  %476 = vmatpush.msra.mxu0 %v475
  %v477 = vand.u32 %v421, 4294901760
  %v478 = vsub.f32 %v421, %v477
  %v479 = vand.u32 %v478, 4294901760
  %v480 = vsub.f32 %v478, %v479
  %v481 = vand.u32 %v480, 4294901760
  %482 = vmatpush.msra.mxu0 %v481
  %v483 = vand.u32 %v420, 4294901760
  %v484 = vsub.f32 %v420, %v483
  %v485 = vand.u32 %v484, 4294901760
  %v486 = vsub.f32 %v484, %v485
  %v487 = vand.u32 %v486, 4294901760
  %488 = vmatpush.msra.mxu0 %v487
  %v489 = vand.u32 %v419, 4294901760
  %v490 = vsub.f32 %v419, %v489
  %v491 = vand.u32 %v490, 4294901760
  %v492 = vsub.f32 %v490, %v491
  %v493 = vand.u32 %v492, 4294901760
  %494 = vmatpush.msra.mxu0 %v493
  %v495 = vand.u32 %v428, 4294901760
  %496 = vmatmul.f32.gmra.mxu0 %v495
  %v497 = vpop.f32.mrf.mxu0
  %v498 = vadd.f32 %v457, %v497
  %499 = vdwg.mxu0
  %500 = vmatpush.msra.mxu0 0.0
  %501 = vmatpush.msra.mxu0 0.0
  %502 = vmatpush.msra.mxu0 0.0
  %503 = vmatpush.msra.mxu0 0.0
  %504 = vmatpush.msra.mxu0 0.0
  %505 = vmatpush.msra.mxu0 0.0
  %506 = vmatpush.msra.mxu0 0.0
  %507 = vmatpush.msra.mxu0 0.0
  %508 = vmatpush.msra.mxu0 0.0
  %509 = vmatpush.msra.mxu0 0.0
  %510 = vmatpush.msra.mxu0 0.0
  %511 = vmatpush.msra.mxu0 0.0
  %v512 = vand.u32 %v422, 4294901760
  %v513 = vsub.f32 %v422, %v512
  %514 = vmatpush.msra.mxu0 %v513
  %v515 = vand.u32 %v421, 4294901760
  %v516 = vsub.f32 %v421, %v515
  %517 = vmatpush.msra.mxu0 %v516
  %v518 = vand.u32 %v420, 4294901760
  %v519 = vsub.f32 %v420, %v518
  %520 = vmatpush.msra.mxu0 %v519
  %v521 = vand.u32 %v419, 4294901760
  %v522 = vsub.f32 %v419, %v521
  %523 = vmatpush.msra.mxu0 %v522
  %v524 = vand.u32 %v428, 4294901760
  %v525 = vsub.f32 %v428, %v524
  %526 = vmatmul.f32.gmra.mxu0 %v525
  %v527 = vpop.f32.mrf.mxu0
  %v528 = vadd.f32 %v498, %v527
  %529 = vdwg.mxu0
  %530 = vmatpush.msra.mxu0 0.0
  %531 = vmatpush.msra.mxu0 0.0
  %532 = vmatpush.msra.mxu0 0.0
  %533 = vmatpush.msra.mxu0 0.0
  %534 = vmatpush.msra.mxu0 0.0
  %535 = vmatpush.msra.mxu0 0.0
  %536 = vmatpush.msra.mxu0 0.0
  %537 = vmatpush.msra.mxu0 0.0
  %538 = vmatpush.msra.mxu0 0.0
  %539 = vmatpush.msra.mxu0 0.0
  %540 = vmatpush.msra.mxu0 0.0
  %541 = vmatpush.msra.mxu0 0.0
  %v542 = vand.u32 %v422, 4294901760
  %543 = vmatpush.msra.mxu0 %v542
  %v544 = vand.u32 %v421, 4294901760
  %545 = vmatpush.msra.mxu0 %v544
  %v546 = vand.u32 %v420, 4294901760
  %547 = vmatpush.msra.mxu0 %v546
  %v548 = vand.u32 %v419, 4294901760
  %549 = vmatpush.msra.mxu0 %v548
  %v550 = vand.u32 %v428, 4294901760
  %v551 = vsub.f32 %v428, %v550
  %v552 = vand.u32 %v551, 4294901760
  %553 = vmatmul.f32.gmra.mxu0 %v552
  %v554 = vpop.f32.mrf.mxu0
  %v555 = vadd.f32 %v528, %v554
  %556 = vdwg.mxu0
  %557 = vmatpush.msra.mxu0 0.0
  %558 = vmatpush.msra.mxu0 0.0
  %559 = vmatpush.msra.mxu0 0.0
  %560 = vmatpush.msra.mxu0 0.0
  %561 = vmatpush.msra.mxu0 0.0
  %562 = vmatpush.msra.mxu0 0.0
  %563 = vmatpush.msra.mxu0 0.0
  %564 = vmatpush.msra.mxu0 0.0
  %565 = vmatpush.msra.mxu0 0.0
  %566 = vmatpush.msra.mxu0 0.0
  %567 = vmatpush.msra.mxu0 0.0
  %568 = vmatpush.msra.mxu0 0.0
  %v569 = vand.u32 %v422, 4294901760
  %v570 = vsub.f32 %v422, %v569
  %v571 = vand.u32 %v570, 4294901760
  %572 = vmatpush.msra.mxu0 %v571
  %v573 = vand.u32 %v421, 4294901760
  %v574 = vsub.f32 %v421, %v573
  %v575 = vand.u32 %v574, 4294901760
  %576 = vmatpush.msra.mxu0 %v575
  %v577 = vand.u32 %v420, 4294901760
  %v578 = vsub.f32 %v420, %v577
  %v579 = vand.u32 %v578, 4294901760
  %580 = vmatpush.msra.mxu0 %v579
  %v581 = vand.u32 %v419, 4294901760
  %v582 = vsub.f32 %v419, %v581
  %v583 = vand.u32 %v582, 4294901760
  %584 = vmatpush.msra.mxu0 %v583
  %v585 = vand.u32 %v428, 4294901760
  %586 = vmatmul.f32.gmra.mxu0 %v585
  %v587 = vpop.f32.mrf.mxu0
  %v588 = vadd.f32 %v555, %v587
  %589 = vdwg.mxu0
  %590 = vmatpush.msra.mxu0 0.0
  %591 = vmatpush.msra.mxu0 0.0
  %592 = vmatpush.msra.mxu0 0.0
  %593 = vmatpush.msra.mxu0 0.0
  %594 = vmatpush.msra.mxu0 0.0
  %595 = vmatpush.msra.mxu0 0.0
  %596 = vmatpush.msra.mxu0 0.0
  %597 = vmatpush.msra.mxu0 0.0
  %598 = vmatpush.msra.mxu0 0.0
  %599 = vmatpush.msra.mxu0 0.0
  %600 = vmatpush.msra.mxu0 0.0
  %601 = vmatpush.msra.mxu0 0.0
  %v602 = vand.u32 %v422, 4294901760
  %603 = vmatpush.msra.mxu0 %v602
  %v604 = vand.u32 %v421, 4294901760
  %605 = vmatpush.msra.mxu0 %v604
  %v606 = vand.u32 %v420, 4294901760
  %607 = vmatpush.msra.mxu0 %v606
  %v608 = vand.u32 %v419, 4294901760
  %609 = vmatpush.msra.mxu0 %v608
  %v610 = vand.u32 %v428, 4294901760
  %611 = vmatmul.f32.gmra.mxu0 %v610
  %v612 = vpop.f32.mrf.mxu0
  %v613 = vadd.f32 %v588, %v612
  %614 = vdwg.mxu0
  %vm615 = vcmask 64512
  %616 = vst.msk [vmem:[%s7] sm:$0xff] %vm615, %v613
  // Predicated region
  $region30: #{predictor_forward.1} parent=0 // pred_check
    _
  $region31: #{predictor_forward.1} parent=0 // pred_check_branch
    %618 = sbr.rel (0) target = $region33
  $region32: #{predictor_forward.1} parent=0 // pred_region
    _
  $region33: #{predictor_forward.1} parent=0 // pred_fallthru
    _
  // Predicated region
  $region34: #{predictor_forward.1} parent=0 // pred_check
    _
  $region35: #{predictor_forward.1} parent=0 // pred_check_branch
    %620 = sbr.rel (0) target = $region37
  $region36: #{predictor_forward.1} parent=0 // pred_region
    _
  $region37: #{predictor_forward.1} parent=0 // pred_fallthru
    _

</llo_original>
